<compile_context>
chip_gen: v5e
topology: v5e:2x2
jax: 0.10.0
libtpu: 0.0.40
codegen_flags: <defaults>
</compile_context>

<pallas_src>
import functools

import jax
import jax.numpy as jnp
from jax import lax
from jax.experimental import pallas as pl
from jax.experimental.pallas import tpu as pltpu


def attention_kernel(tb, T, x_ref, wt_ref, b_ref, v_ref, lens_ref, out_ref):
    # x_ref   : (tb*T, H)  f32  VMEM   (natural K width, no padding)
    # wt_ref  : (H, Hp)    bf16 VMEM   (W.T, output side zero-padded to Hp)
    # b_ref   : (1, Hp)    f32  VMEM   (bias, zero-padded)
    # v_ref   : (Hp, 1)    f32  VMEM   (attention vector as a column, zero-padded)
    # lens_ref: (tb, 1)    i32  VMEM   (sequence lengths for this batch tile)
    # out_ref : (tb, Hp)   f32  VMEM   (lane-dense output)
    Hp = wt_ref.shape[1]

    # ---- h = tanh(x @ W.T + b): bf16 MXU operands, f32 accumulation/elementwise ----
    h2d = jnp.dot(x_ref[...].astype(jnp.bfloat16), wt_ref[...],
                  preferred_element_type=jnp.float32)          # (tb*T, Hp) f32
    h2d = jnp.tanh(h2d + b_ref[...])                           # f32 VPU/EUP, 2-D broadcast
    # Pure sublane split when T % 8 == 0 (true here); otherwise a retile copy
    # (still correct, just slower).
    h3 = h2d.reshape(tb, T, Hp)                                # (tb, T, Hp)

    # ---- logits = h . v on the MXU: (tb*T, Hp) x (Hp, 1) -> (tb*T, 1) ----
    logits = jnp.dot(h2d, v_ref[...],
                     preferred_element_type=jnp.float32)       # (tb*T, 1)
    logits = logits.reshape(tb, T, 1)                          # sublane regroup only

    # ---- softmax in (b, t, 1) layout: per-row max (== global max after norm) ----
    m = jnp.max(logits, axis=1, keepdims=True)                 # (tb, 1, 1)
    unnorm = jnp.exp(logits - m)                               # (tb, T, 1), f32 EUP

    # ---- length mask: one vectorized compare, no per-batch unroll ----
    iota_t = lax.broadcasted_iota(jnp.int32, (tb, T, 1), 1)
    lens3 = lens_ref[...].reshape(tb, 1, 1)
    masked = jnp.where(iota_t < lens3, unnorm, 0.0)            # (tb, T, 1)

    att_sums = jnp.sum(masked, axis=1, keepdims=True)          # (tb, 1, 1)
    # Exact divide (tiny tensor).  Note: a zero-length row gives 0/0 = NaN,
    # exactly like the PyTorch reference.
    att = masked / att_sums                                    # (tb, T, 1)

    # ---- representations: batched MXU contraction over T, bf16 operands ----
    rep = jnp.einsum("btk,bth->bkh",
                     att.astype(jnp.bfloat16), h3.astype(jnp.bfloat16),
                     preferred_element_type=jnp.float32)       # (tb, 1, Hp)
    out_ref[...] = rep[:, 0, :].astype(out_ref.dtype)          # (tb, Hp), lane-dense


def attention_forward(x, W, b, v, input_lengths, *, batch_tile=None):
    """x: (B,T,H) f32; W: (H,H); b: (H,); v: (H,); input_lengths: (B,) int."""
    B, T, H = x.shape
    Hp = ((H + 127) // 128) * 128   # lane-dense feature width for h / out

    # Pad only the output (N) side of the parameters; padded channels of h are
    # tanh(0 + 0) = 0 and contribute nothing to logits or representations.
    wt_p = jnp.pad(W.T, ((0, 0), (0, Hp - H))).astype(jnp.bfloat16)   # (H, Hp)
    b_p = jnp.pad(b, (0, Hp - H)).reshape(1, Hp)                      # (1, Hp) f32
    v_p = jnp.pad(v, (0, Hp - H)).reshape(Hp, 1)                      # (Hp, 1) f32
    x2d = x.reshape(B * T, H)                                         # no K padding
    lens = input_lengths.astype(jnp.int32).reshape(B, 1)

    # Batch tile: whole batch when small; otherwise a multiple-of-8 divisor of B
    # so lens/out blocks stay sublane-aligned and per-step VMEM stays small
    # (v7x: 64 MiB physical / 32 MiB scoped).
    if batch_tile is not None:
        tb = batch_tile
    else:
        tb = B
        if B > 8 and B % 8 == 0:
            tb = 8
            while tb * 2 * T <= 2048 and B % (tb * 2) == 0 and tb * 2 < B:
                tb *= 2
    assert B % tb == 0, "batch tile must divide B"
    assert tb == B or tb % 8 == 0, "partial batch tiles must be a multiple of 8"
    grid = (B // tb,)

    kernel = functools.partial(attention_kernel, tb, T)

    flops = 2 * B * T * H * Hp + 2 * B * T * Hp + 2 * B * T * Hp
    transcendentals = B * T * Hp + B * T          # tanh + exp
    bytes_accessed = (x2d.size * 4 + wt_p.size * 2 + b_p.size * 4
                      + v_p.size * 4 + lens.size * 4 + B * Hp * 4)

    out_p = pl.pallas_call(
        kernel,
        out_shape=jax.ShapeDtypeStruct((B, Hp), jnp.float32),
        grid=grid,
        in_specs=[
            pl.BlockSpec((tb * T, H), lambda i: (i, 0)),   # x rows for this batch tile
            pl.BlockSpec((H, Hp), lambda i: (0, 0)),       # W.T (bf16, pinned)
            pl.BlockSpec((1, Hp), lambda i: (0, 0)),       # bias (pinned)
            pl.BlockSpec((Hp, 1), lambda i: (0, 0)),       # attention vector (pinned)
            pl.BlockSpec((tb, 1), lambda i: (i, 0)),       # lengths for this tile
        ],
        out_specs=pl.BlockSpec((tb, Hp), lambda i: (i, 0)),
        compiler_params=pltpu.CompilerParams(
            dimension_semantics=("parallel",)),
        cost_estimate=pl.CostEstimate(flops=flops,
                                      transcendentals=transcendentals,
                                      bytes_accessed=bytes_accessed),
    )(x2d, wt_p, b_p, v_p, lens)

    return out_p[:, :H]


def reference_forward(x, W, b, v, input_lengths):
    """Pure-JAX (f32) reference mirroring the PyTorch module."""
    h = jnp.tanh(jnp.einsum("bth,kh->btk", x, W) + b)      # Linear: x @ W.T + b
    logits = jnp.einsum("bth,h->bt", h, v)
    unnorm = jnp.exp(logits - jnp.max(logits))             # global max, as in torch
    T = x.shape[1]
    idx = jnp.arange(T)[None, :]
    mask = (idx < input_lengths[:, None]).astype(jnp.float32)
    masked = unnorm * mask
    att = masked / jnp.sum(masked, axis=1, keepdims=True)
    return jnp.sum(h * att[:, :, None], axis=1)


if __name__ == "__main__":
    def _run_case(key, B, T, H, lengths, batch_tile=None):
        k_x, k_w, k_b, k_v = jax.random.split(key, 4)
        x = jax.random.normal(k_x, (B, T, H), dtype=jnp.float32)
        # nn.Linear(H, H) default init: U(-1/sqrt(H), 1/sqrt(H)); attention vector U(-0.01, 0.01)
        bound = 1.0 / float(H) ** 0.5
        W = jax.random.uniform(k_w, (H, H), jnp.float32, -bound, bound)
        b = jax.random.uniform(k_b, (H,), jnp.float32, -bound, bound)
        v = jax.random.uniform(k_v, (H,), jnp.float32, -0.01, 0.01)
        lens = jnp.asarray(lengths, dtype=jnp.int32)

        out = jax.block_until_ready(
            attention_forward(x, W, b, v, lens, batch_tile=batch_tile))
        ref = reference_forward(x, W, b, v, lens)
        assert out.shape == (B, H)
        # Tolerance covers bf16 MXU operands (f32 accumulation) vs. the f32 reference.
        max_diff = float(jnp.max(jnp.abs(out - ref)))
        assert jnp.allclose(out, ref, atol=2e-2, rtol=2e-2), (
            f"mismatch vs reference (max abs diff {max_diff})")
        return out

    key = jax.random.PRNGKey(0)
    k1, k2 = jax.random.split(key)

    # Small case from the module spec: whole batch in one grid step (grid=(1,)).
    _run_case(k1, B=2, T=8, H=32, lengths=[8, 5])

    # Larger batch: exercises the batch-tiled, pipelined grid (tb=8 -> grid=(2,),
    # "parallel" axis for megacore sharding on v7x).
    _run_case(k2, B=16, T=8, H=32,
              lengths=[8, 5, 3, 8, 1, 7, 2, 6, 8, 4, 5, 8, 3, 7, 6, 2])

    print("KERNEL_OK")
</pallas_src>

<mosaic_0001>
module attributes {stable_mosaic.version = 11 : i64} {
  func.func @attention_kernel(%arg0: i32, %arg1: memref<16x32xf32, #tpu.memory_space<vmem>>, %arg2: memref<32x128xbf16, #tpu.memory_space<vmem>>, %arg3: memref<1x128xf32, #tpu.memory_space<vmem>>, %arg4: memref<128x1xf32, #tpu.memory_space<vmem>>, %arg5: memref<2x1xi32, #tpu.memory_space<vmem>>, %arg6: memref<2x128xf32, #tpu.memory_space<vmem>>) attributes {dimension_semantics = [#tpu.dimension_semantics<parallel>], iteration_bounds = array<i64: 1>, scalar_prefetch = 0 : i64, scratch_operands = 0 : i64, tpu.core_type = #tpu.core_type<tc>, window_params = [{transform_indices = @transform_0, window_bounds = array<i64: 16, 32>}, {pipeline_mode = #tpu.pipeline_mode<synchronous>, transform_indices = @transform_1, window_bounds = array<i64: 32, 128>}, {pipeline_mode = #tpu.pipeline_mode<synchronous>, transform_indices = @transform_2, window_bounds = array<i64: 1, 128>}, {pipeline_mode = #tpu.pipeline_mode<synchronous>, transform_indices = @transform_3, window_bounds = array<i64: 128, 1>}, {transform_indices = @transform_4, window_bounds = array<i64: 2, 1>}, {transform_indices = @transform_5, window_bounds = array<i64: 2, 128>}]} {
    %c0 = arith.constant 0 : index
    %c0_0 = arith.constant 0 : index
    %0 = vector.load %arg1[%c0, %c0_0] : memref<16x32xf32, #tpu.memory_space<vmem>>, vector<16x32xf32>
    %1 = arith.truncf %0 : vector<16x32xf32> to vector<16x32xbf16>
    %c0_1 = arith.constant 0 : index
    %c0_2 = arith.constant 0 : index
    %2 = vector.load %arg2[%c0_1, %c0_2] : memref<32x128xbf16, #tpu.memory_space<vmem>>, vector<32x128xbf16>
    %cst = arith.constant dense<0.000000e+00> : vector<16x128xf32>
    %3 = tpu.matmul %1, %2, %cst {dimension_numbers = #tpu.dot_dimension_numbers<[1], [0], [0], [1], [0, 0, 1, 1], [], []>} : vector<16x32xbf16>, vector<32x128xbf16>, vector<16x128xf32> -> vector<16x128xf32>
    %c0_3 = arith.constant 0 : index
    %c0_4 = arith.constant 0 : index
    %4 = vector.load %arg3[%c0_3, %c0_4] : memref<1x128xf32, #tpu.memory_space<vmem>>, vector<1x128xf32>
    %5 = vector.broadcast %4 : vector<1x128xf32> to vector<16x128xf32>
    %6 = arith.addf %3, %5 : vector<16x128xf32>
    %7 = math.tanh %6 : vector<16x128xf32>
    %8 = vector.shape_cast %7 : vector<16x128xf32> to vector<2x8x128xf32>
    %c0_5 = arith.constant 0 : index
    %c0_6 = arith.constant 0 : index
    %9 = vector.load %arg4[%c0_5, %c0_6] : memref<128x1xf32, #tpu.memory_space<vmem>>, vector<128x1xf32>
    %cst_7 = arith.constant dense<0.000000e+00> : vector<16x1xf32>
    %10 = tpu.matmul %7, %9, %cst_7 {dimension_numbers = #tpu.dot_dimension_numbers<[1], [0], [0], [1], [0, 0, 1, 1], [], []>} : vector<16x128xf32>, vector<128x1xf32>, vector<16x1xf32> -> vector<16x1xf32>
    %11 = vector.shape_cast %10 : vector<16x1xf32> to vector<2x8x1xf32>
    %cst_8 = arith.constant dense<0xFF800000> : vector<2x1xf32>
    %12 = vector.multi_reduction <maximumf>, %11, %cst_8 [1] : vector<2x8x1xf32> to vector<2x1xf32>
    %13 = vector.shape_cast %12 : vector<2x1xf32> to vector<2x1x1xf32>
    %14 = vector.broadcast %13 : vector<2x1x1xf32> to vector<2x8x1xf32>
    %15 = arith.subf %11, %14 : vector<2x8x1xf32>
    %16 = math.exp %15 : vector<2x8x1xf32>
    %17 = tpu.iota {dimensions = array<i32: 1>} : vector<2x8x1xi32>
    %c0_9 = arith.constant 0 : index
    %c0_10 = arith.constant 0 : index
    %18 = vector.load %arg5[%c0_9, %c0_10] : memref<2x1xi32, #tpu.memory_space<vmem>>, vector<2x1xi32>
    %19 = vector.shape_cast %18 : vector<2x1xi32> to vector<2x1x1xi32>
    %20 = vector.broadcast %19 : vector<2x1x1xi32> to vector<2x8x1xi32>
    %21 = arith.cmpi slt, %17, %20 : vector<2x8x1xi32>
    %cst_11 = arith.constant 0.000000e+00 : f32
    %22 = vector.broadcast %cst_11 : f32 to vector<2x8x1xf32>
    %23 = arith.select %21, %16, %22 : vector<2x8x1xi1>, vector<2x8x1xf32>
    %cst_12 = arith.constant dense<0.000000e+00> : vector<2x1xf32>
    %24 = vector.multi_reduction <add>, %23, %cst_12 [1] : vector<2x8x1xf32> to vector<2x1xf32>
    %25 = vector.shape_cast %24 : vector<2x1xf32> to vector<2x1x1xf32>
    %26 = vector.broadcast %25 : vector<2x1x1xf32> to vector<2x8x1xf32>
    %27 = arith.divf %23, %26 : vector<2x8x1xf32>
    %28 = arith.truncf %27 : vector<2x8x1xf32> to vector<2x8x1xbf16>
    %29 = arith.truncf %8 : vector<2x8x128xf32> to vector<2x8x128xbf16>
    "tpu.trace_start"() <{level = 10 : i32, message = "btk,bth->bkh"}> : () -> ()
    %cst_13 = arith.constant dense<0.000000e+00> : vector<2x1x128xf32>
    %30 = tpu.matmul %28, %29, %cst_13 {dimension_numbers = #tpu.dot_dimension_numbers<[1], [1], [2], [2], [0, 0, 0, 2, 1, 2], [0], [0]>} : vector<2x8x1xbf16>, vector<2x8x128xbf16>, vector<2x1x128xf32> -> vector<2x1x128xf32>
    "tpu.trace_stop"() : () -> ()
    %31 = vector.shape_cast %30 : vector<2x1x128xf32> to vector<2x128xf32>
    %c0_14 = arith.constant 0 : index
    %c0_15 = arith.constant 0 : index
    %32 = vector.load %arg6[%c0_14, %c0_15] : memref<2x128xf32, #tpu.memory_space<vmem>>, vector<2x128xf32>
    tpu.vector_store %arg6[%c0_14, %c0_15], %31 {strides = array<i32>} : memref<2x128xf32, #tpu.memory_space<vmem>>, vector<2x128xf32>,
    return
  }
  func.func @transform_0(%arg0: i32) -> (i32, i32) {
    %c0_i32 = arith.constant 0 : i32
    %c0_i32_0 = arith.constant 0 : i32
    return %arg0, %c0_i32 : i32, i32
  }
  func.func @transform_1(%arg0: i32) -> (i32, i32) {
    %c0_i32 = arith.constant 0 : i32
    %c0_i32_0 = arith.constant 0 : i32
    %c0_i32_1 = arith.constant 0 : i32
    return %c0_i32, %c0_i32_0 : i32, i32
  }
  func.func @transform_2(%arg0: i32) -> (i32, i32) {
    %c0_i32 = arith.constant 0 : i32
    %c0_i32_0 = arith.constant 0 : i32
    %c0_i32_1 = arith.constant 0 : i32
    return %c0_i32, %c0_i32_0 : i32, i32
  }
  func.func @transform_3(%arg0: i32) -> (i32, i32) {
    %c0_i32 = arith.constant 0 : i32
    %c0_i32_0 = arith.constant 0 : i32
    %c0_i32_1 = arith.constant 0 : i32
    return %c0_i32, %c0_i32_0 : i32, i32
  }
  func.func @transform_4(%arg0: i32) -> (i32, i32) {
    %c0_i32 = arith.constant 0 : i32
    %c0_i32_0 = arith.constant 0 : i32
    return %arg0, %c0_i32 : i32, i32
  }
  func.func @transform_5(%arg0: i32) -> (i32, i32) {
    %c0_i32 = arith.constant 0 : i32
    %c0_i32_0 = arith.constant 0 : i32
    return %arg0, %c0_i32 : i32, i32
  }
}

</mosaic_0001>

<llo_original>
// kernel: tpu_custom_call.1
$region0: #{tpu_custom_call.1}
  #allocation0 [shape = 'u32[]', space=smem, size = 0x4, offset = 0x4, fixed_abs, tag = 'smem constant byte address 0x4 - core index']
  #allocation1 [shape = 'u32[72,128]{1,0:T(1,128)}', space=vmem, size = 0x9000, scoped, tag = 'internal scratch']
  %s0 = inlined_call_operand.vmem [shape: f32[16,32], index: 0, kind: input, shape index: {}]
  %s1 = inlined_call_operand.vmem [shape: bf16[32,128], index: 1, kind: input, shape index: {}]
  %s2 = inlined_call_operand.vmem [shape: f32[1,128], index: 2, kind: input, shape index: {}]
  %s3 = inlined_call_operand.vmem [shape: f32[128,1], index: 3, kind: input, shape index: {}]
  %s4 = inlined_call_operand.vmem [shape: s32[2,1], index: 4, kind: input, shape index: {}]
  %s5 = inlined_call_operand.hbm [shape: f32[2,128], index: 5, kind: output, shape index: {}]
  %s6 = sld [smem:[#allocation0]]
  $region30: #{tpu_custom_call.1} parent=0
    _
  %s8 = ssub.s32 1, %s6
  %s9 = scalar_select 0, %s8, %s6
  $region1: #{tpu_custom_call.1} parent=0
    #allocation2 [shape = 'u8[1024]{0}', space=vmem, size = 0x400, scoped, tag = 'output window, operand 0, single buffered']
    #allocation3 [shape = 's32[1]{0}', space=sflag, size = 0x4, scoped, tag = 'scoped memory for tpu_custom_call.1']
    %10 = vsyncpa [#allocation3], 0
    // Predicated region
    $region2: #{tpu_custom_call.1} parent=1 // pred_check
      _
    $region3: #{tpu_custom_call.1} parent=1 // pred_check_branch
      %12 = sbr.rel (0) target = $region5
    $region4: #{tpu_custom_call.1} parent=1 // pred_region
      _
    $region5: #{tpu_custom_call.1} parent=1 // pred_fallthru
      _
    // Predicated region
    $region6: #{tpu_custom_call.1} parent=1 // pred_check
      _
    $region7: #{tpu_custom_call.1} parent=1 // pred_check_branch
      %14 = sbr.rel (0) target = $region9
    $region8: #{tpu_custom_call.1} parent=1 // pred_region
      _
    $region9: #{tpu_custom_call.1} parent=1 // pred_fallthru
      _
    // Predicated region
    $region10: #{tpu_custom_call.1} parent=1 // pred_check
      _
    $region11: #{tpu_custom_call.1} parent=1 // pred_check_branch
      %16 = sbr.rel (0) target = $region13
    $region12: #{tpu_custom_call.1} parent=1 // pred_region
      _
    $region13: #{tpu_custom_call.1} parent=1 // pred_fallthru
      _
    // Predicated region
    $region14: #{tpu_custom_call.1} parent=1 // pred_check
      _
    $region15: #{tpu_custom_call.1} parent=1 // pred_check_branch
      %18 = sbr.rel (0) target = $region17
    $region16: #{tpu_custom_call.1} parent=1 // pred_region
      _
    $region17: #{tpu_custom_call.1} parent=1 // pred_fallthru
      _
    // Predicated region
    $region18: #{tpu_custom_call.1} parent=1 // pred_check
      _
    $region19: #{tpu_custom_call.1} parent=1 // pred_check_branch
      %20 = sbr.rel (0) target = $region21
    $region20: #{tpu_custom_call.1} parent=1 // pred_region
      _
    $region21: #{tpu_custom_call.1} parent=1 // pred_fallthru
      _
    %v22 = vld [vmem:[%s0] sm:$0xff]
    %v23 = vld [vmem:[%s0 + $0x8] sm:$0xff]
    %v24 = vpack.c.bf16 %v23, %v22
    %v25 = vld [vmem:[%s1] sm:$0xf]
    %v26 = vld [vmem:[%s1 + $0x4] sm:$0xf]
    %v27 = vld [vmem:[%s1 + $0x8] sm:$0xf]
    %v28 = vld [vmem:[%s1 + $0xc] sm:$0xf]
    %v29 = vld [vmem:[%s2] sm:$0x1]
    %v31 = vperm.slane %v29, 0
    %v37 = vunpack.c.l.b16 %v25
    %v38 = vunpack.c.l.b16 %v26
    %v39 = vunpack.c.l.b16 %v27
    %v40 = vunpack.c.l.b16 %v28
    %v41 = vpack.c.b16 %v38, %v37
    %v42 = vpack.c.b16 %v40, %v39
    %vm45 = vcmask 261120
    %v47 = vsel %vm45, %v24, 0
    %49 = vmatpush.bf16.msra.mxu0 0
    %50 = vmatpush.bf16.msra.mxu0 0
    %51 = vmatpush.bf16.msra.mxu0 0
    %52 = vmatpush.bf16.msra.mxu0 0
    %53 = vmatpush.bf16.msra.mxu0 0
    %54 = vmatpush.bf16.msra.mxu0 0
    %55 = vmatpush.bf16.msra.mxu0 %v42
    %56 = vmatpush.bf16.msra.mxu0 %v41
    %57 = vmatmul.bf16.gmra.mxu0 %v47
    %v58 = vpop.f32.mrf.mxu0
    %v59 = vadd.f32 %v31, %v58
    %v60 = vpop.f32.mrf.mxu0
    %v61 = vadd.f32 %v31, %v60
    %62 = vdwg.mxu0
    %v63 = vtanh.pop %v59
    %v64 = vtanh.pop %v61
    %v65 = vld [vmem:[%s3] sm:$0xff]
    %v66 = vld [vmem:[%s3 + $0x8] sm:$0xff]
    %v67 = vld [vmem:[%s3 + $0x10] sm:$0xff]
    %v68 = vld [vmem:[%s3 + $0x18] sm:$0xff]
    %v69 = vld [vmem:[%s3 + $0x20] sm:$0xff]
    %v70 = vld [vmem:[%s3 + $0x28] sm:$0xff]
    %v71 = vld [vmem:[%s3 + $0x30] sm:$0xff]
    %v72 = vld [vmem:[%s3 + $0x38] sm:$0xff]
    %v73 = vld [vmem:[%s3 + $0x40] sm:$0xff]
    %v74 = vld [vmem:[%s3 + $0x48] sm:$0xff]
    %v75 = vld [vmem:[%s3 + $0x50] sm:$0xff]
    %v76 = vld [vmem:[%s3 + $0x58] sm:$0xff]
    %v77 = vld [vmem:[%s3 + $0x60] sm:$0xff]
    %v78 = vld [vmem:[%s3 + $0x68] sm:$0xff]
    %v79 = vld [vmem:[%s3 + $0x70] sm:$0xff]
    %v80 = vld [vmem:[%s3 + $0x78] sm:$0xff]
    %81 = vmatpush.msra.mxu0 %v80
    %82 = vmatpush.msra.mxu0 %v79
    %83 = vmatpush.msra.mxu0 %v78
    %84 = vmatpush.msra.mxu0 %v77
    %85 = vmatpush.msra.mxu0 %v76
    %86 = vmatpush.msra.mxu0 %v75
    %87 = vmatpush.msra.mxu0 %v74
    %88 = vmatpush.msra.mxu0 %v73
    %89 = vmatpush.msra.mxu0 %v72
    %90 = vmatpush.msra.mxu0 %v71
    %91 = vmatpush.msra.mxu0 %v70
    %92 = vmatpush.msra.mxu0 %v69
    %93 = vmatpush.msra.mxu0 %v68
    %94 = vmatpush.msra.mxu0 %v67
    %95 = vmatpush.msra.mxu0 %v66
    %96 = vmatpush.msra.mxu0 %v65
    %97 = vmatmul.f32.gmra.mxu0 %v63
    %v98 = vpop.f32.mrf.mxu0
    %v99 = vadd.f32 0.0, %v98
    %100 = vmatmul.f32.gmra.mxu0 %v64
    %v101 = vpop.f32.mrf.mxu0
    %v102 = vadd.f32 0.0, %v101
    %103 = vdwg.mxu0
    %vm104 = vcmask 7168
    %v105 = vsel %vm104, %v99, -inf
    %v106 = vrot.slane %v105, 4
    %v107 = vmax.f32 %v105, %v106
    %v108 = vrot.slane %v107, 2
    %v109 = vmax.f32 %v107, %v108
    %v110 = vrot.slane %v109, 1
    %v111 = vmax.f32 %v109, %v110
    %v112 = vsel %vm104, %v102, -inf
    %v113 = vrot.slane %v112, 4
    %v114 = vmax.f32 %v112, %v113
    %v115 = vrot.slane %v114, 2
    %v116 = vmax.f32 %v114, %v115
    %v117 = vrot.slane %v116, 1
    %v118 = vmax.f32 %v116, %v117
    %v119 = vsub.f32 %v99, %v111
    %v120 = vsub.f32 %v102, %v118
    %v121 = vmul.f32 %v119, 1.442695
    %v122 = vpow.pop %v121
    %v123 = vmul.f32 %v120, 1.442695
    %v124 = vpow.pop %v123
    %v125 = vlaneseq
    %v126 = vshrl.u32 %v125, 7
    %v127 = vld [vmem:[%s4] sm:$0x3]
    %v128 = vrot.slane %v127, 1
    %v129 = vperm.slane %v127, 0
    %v130 = vperm.slane %v128, 0
    %vm131 = vcmp.lt.s32.totalorder %v126, %v129
    %vm132 = vcmp.lt.s32.totalorder %v126, %v130
    %v133 = vsel %vm131, %v122, 0.0
    %v134 = vsel %vm132, %v124, 0.0
    %v135 = vsel %vm104, %v133, 0.0
    %v136 = vrot.slane %v135, 4
    %v137 = vadd.f32 %v135, %v136
    %v138 = vrot.slane %v137, 2
    %v139 = vadd.f32 %v137, %v138
    %v140 = vrot.slane %v139, 1
    %v141 = vadd.f32 %v139, %v140
    %v142 = vsel %vm104, %v134, 0.0
    %v143 = vrot.slane %v142, 4
    %v144 = vadd.f32 %v142, %v143
    %v145 = vrot.slane %v144, 2
    %v146 = vadd.f32 %v144, %v145
    %v147 = vrot.slane %v146, 1
    %v148 = vadd.f32 %v146, %v147
    %v149 = vrcp.pop %v141
    %v150 = vmul.f32 %v141, %v149
    %v151 = vsub.f32 1.0, %v150
    %v152 = vmul.f32 %v149, %v151
    %v153 = vadd.f32 %v149, %v152
    %vm154 = vweird.f32 %v141
    %vm155 = vweird.f32 %v149
    %vm156 = vmor %vm154, %vm155
    %v157 = vsel %vm156, %v149, %v153
    %v158 = vand.u32 2147483647, %v141
    %vm159 = vcmp.eq.f32.partialorder %v158, 8.507059e+37
    %v160 = vand.u32 %v141, 2147483648
    %v161 = vor.u32 1.1754944e-38, %v160
    %v162 = vsel %vm159, %v161, %v157
    %v163 = vmul.f32 %v133, %v162
    %v164 = vrcp.pop %v148
    %v165 = vmul.f32 %v148, %v164
    %v166 = vsub.f32 1.0, %v165
    %v167 = vmul.f32 %v164, %v166
    %v168 = vadd.f32 %v164, %v167
    %vm169 = vweird.f32 %v148
    %vm170 = vweird.f32 %v164
    %vm171 = vmor %vm169, %vm170
    %v172 = vsel %vm171, %v164, %v168
    %v173 = vand.u32 2147483647, %v148
    %vm174 = vcmp.eq.f32.partialorder %v173, 8.507059e+37
    %v175 = vand.u32 %v148, 2147483648
    %v176 = vor.u32 1.1754944e-38, %v175
    %v177 = vsel %vm174, %v176, %v172
    %v178 = vmul.f32 %v134, %v177
    %v179 = vpack.c.bf16 %v163, %v163
    %v180 = vpack.c.bf16 %v178, %v178
    %v181 = vpack.c.bf16 %v63, %v63
    %v182 = vpack.c.bf16 %v64, %v64
    %183 = vxpose.xlu0.c.b16.start [1/8] %v179, 128
    %184 = vxpose.xlu0.c.b16.cont [2/8] 0, 128
    %185 = vxpose.xlu0.c.b16.cont [3/8] 0, 128
    %186 = vxpose.xlu0.c.b16.cont [4/8] 0, 128
    %187 = vxpose.xlu0.c.b16.cont [5/8] 0, 128
    %188 = vxpose.xlu0.c.b16.cont [6/8] 0, 128
    %189 = vxpose.xlu0.c.b16.cont [7/8] 0, 128
    %190 = vxpose.xlu0.c.b16.end [8/8] 0, 128
    %v191 = vpop.trf.xlu0
    %v192 = vpop.trf.xlu0
    %v193 = vpop.trf.xlu0
    %v194 = vpop.trf.xlu0
    %v195 = vpop.trf.xlu0
    %v196 = vpop.trf.xlu0
    %v197 = vpop.trf.xlu0
    %v198 = vpop.trf.xlu0
    %vm199 = vcmask 64512
    %v201 = vsel %vm199, %v191, 0
    %vm203 = vcmask 1043456
    %v205 = vsel %vm203, %v181, 0
    %207 = vmatpush.bf16.msra.mxu0 0
    %208 = vmatpush.bf16.msra.mxu0 0
    %209 = vmatpush.bf16.msra.mxu0 0
    %210 = vmatpush.bf16.msra.mxu0 0
    %211 = vmatpush.bf16.msra.mxu0 0
    %212 = vmatpush.bf16.msra.mxu0 0
    %213 = vmatpush.bf16.msra.mxu0 0
    %214 = vmatpush.bf16.msra.mxu0 %v205
    %215 = vmatmul.bf16.gmra.mxu0 %v201
    %v216 = vpop.f32.mrf.mxu0
    %v217 = vadd.f32 0.0, %v216
    %v218 = vpop.f32.mrf.mxu0
    %219 = vdwg.mxu0
    %220 = vxpose.xlu0.c.b16.start [1/8] %v180, 128
    %221 = vxpose.xlu0.c.b16.cont [2/8] 0, 128
    %222 = vxpose.xlu0.c.b16.cont [3/8] 0, 128
    %223 = vxpose.xlu0.c.b16.cont [4/8] 0, 128
    %224 = vxpose.xlu0.c.b16.cont [5/8] 0, 128
    %225 = vxpose.xlu0.c.b16.cont [6/8] 0, 128
    %226 = vxpose.xlu0.c.b16.cont [7/8] 0, 128
    %227 = vxpose.xlu0.c.b16.end [8/8] 0, 128
    %v228 = vpop.trf.xlu0
    %v229 = vpop.trf.xlu0
    %v230 = vpop.trf.xlu0
    %v231 = vpop.trf.xlu0
    %v232 = vpop.trf.xlu0
    %v233 = vpop.trf.xlu0
    %v234 = vpop.trf.xlu0
    %v235 = vpop.trf.xlu0
    %v237 = vsel %vm199, %v228, 0
    %v240 = vsel %vm203, %v182, 0
    %242 = vmatpush.bf16.msra.mxu0 0
    %243 = vmatpush.bf16.msra.mxu0 0
    %244 = vmatpush.bf16.msra.mxu0 0
    %245 = vmatpush.bf16.msra.mxu0 0
    %246 = vmatpush.bf16.msra.mxu0 0
    %247 = vmatpush.bf16.msra.mxu0 0
    %248 = vmatpush.bf16.msra.mxu0 0
    %249 = vmatpush.bf16.msra.mxu0 %v240
    %250 = vmatmul.bf16.gmra.mxu0 %v237
    %v251 = vpop.f32.mrf.mxu0
    %v252 = vadd.f32 0.0, %v251
    %v253 = vpop.f32.mrf.mxu0
    %254 = vdwg.mxu0
    %v257 = vrot.slane %v252, 7
    %vm258 = vcmask 1041409
    %v259 = vsel %vm258, %v257, %v217
    %261 = vst [vmem:[#allocation2] sm:$0x3] %v259
    // Predicated region
    $region22: #{tpu_custom_call.1} parent=1 // pred_check
      _
    $region23: #{tpu_custom_call.1} parent=1 // pred_check_branch
      %263 = sbr.rel (0) target = $region25
    $region24: #{tpu_custom_call.1} parent=1 // pred_region
      %265 = vsyncadd [#allocation3], 0
      %s267 = sshll.u32 [#allocation2], 4
      %s268 = int_to_ptr.vmem [resolvable:$true] %s267
      %s269 = sshll.u32 %s5, 4
      %s270 = int_to_ptr.hbm [resolvable:$true] %s269
      %272 = dma.vmem_to_hbm [thread:$0]  %s268, 32, %s270, [#allocation3]
    $region25: #{tpu_custom_call.1} parent=1 // pred_fallthru
      _
    // Predicated region
    $region26: #{tpu_custom_call.1} parent=1 // pred_check
      _
    $region27: #{tpu_custom_call.1} parent=1 // pred_check_branch
      %274 = sbr.rel (0) target = $region29
    $region28: #{tpu_custom_call.1} parent=1 // pred_region
      %276 = dma.done [#allocation3], 32
    $region29: #{tpu_custom_call.1} parent=1 // pred_fallthru
      _
    %277 = vsyncpa [#allocation3], 1

</llo_original>
